<compile_context>
chip_gen: v7x
topology: tpu7x:2x2x1
jax: 0.10.0
libtpu: 0.0.40
codegen_flags: <defaults>
</compile_context>

<pallas_src>
import math

import jax
import jax.numpy as jnp
from jax import lax
from jax.experimental import pallas as pl
from jax.experimental.pallas import tpu as pltpu

EPS = 1e-05
NEG_LOG_EPS = -math.log(EPS)                    # -log(eps)    ~= 11.512925
NEG_LOG_ONE_MINUS_EPS = -math.log(1.0 - EPS)    # -log(1-eps)  ~= 1.0000050e-5

_LANES = 128
_SUBLANES = 8
_VMEM_BUDGET_BYTES = 24 << 20   # working-set target: dbl-buffered streams + params + temps
_VMEM_LIMIT_BYTES = 40 << 20    # scoped VMEM request (< v7x 64 MiB physical, > v5e 16 MiB default)
_TEMP_ROW_BYTES = 8 * _LANES * 4  # ~8 concurrently-live f32 row-temps in the fused body


def _cdiv(a, b):
    return -(-a // b)


def _round_up(a, b):
    return _cdiv(a, b) * b


# ---------------------------------------------------------------------------
# Kernel: accumulate  sum( weight * BCE(clip(sigmoid(z+shift), eps, 1-eps), t) )
# into a lane-dense (8, 128) resident output block per outer (core) grid index.
# The tiny final cross-lane reduce happens in XLA.
# ---------------------------------------------------------------------------
def _make_bce_kernel(tps, tile_rows, total_valid, ragged):
    def kernel(z_ref, t_ref, w_ref, s_ref, out_ref):
        c = pl.program_id(0)
        i = pl.program_id(1)

        @pl.when(i == 0)
        def _():
            out_ref[...] = jnp.zeros_like(out_ref)

        z = z_ref[...].astype(jnp.float32) + s_ref[...]   # logits - v1 + v2
        t = t_ref[...].astype(jnp.float32)

        # Fused logits form (1 exp + 1 log per element on the EUP):
        #   softplus(z)  == -log(1 - sigmoid(z)),  softplus(-z) == -log(sigmoid(z))
        # Clamping to [-log(1-eps), -log(eps)] reproduces clip(sigmoid, eps, 1-eps)
        # semantics exactly.
        lse = jnp.log(1.0 + jnp.exp(-jnp.abs(z)))
        sp_pos = jnp.maximum(z, 0.0) + lse                # -log(1 - p)
        sp_neg = sp_pos - z                               # -log(p)
        sp_pos = jnp.clip(sp_pos, NEG_LOG_ONE_MINUS_EPS, NEG_LOG_EPS)
        sp_neg = jnp.clip(sp_neg, NEG_LOG_ONE_MINUS_EPS, NEG_LOG_EPS)

        # FMA-form select: w * (t*sp_neg + (1-t)*sp_pos) with fewer VALU ops.
        loss = w_ref[...] * (sp_pos + t * (sp_neg - sp_pos))

        if ragged:
            # Only traced when the tile span does not exactly cover B*C elements:
            # masks both the wrapper's partial-row zero pad and any rows of the
            # last tile that hang past the end of the array.
            row0 = (c * tps + i) * tile_rows
            rows = row0 + lax.broadcasted_iota(jnp.int32, loss.shape, 0)
            cols = lax.broadcasted_iota(jnp.int32, loss.shape, 1)
            loss = jnp.where(rows * _LANES + cols < total_valid, loss, 0.0)

        # Bounded-live-range sublane fold into the resident (8, 128) accumulator.
        out_ref[...] += jnp.sum(
            loss.reshape(-1, out_ref.shape[0], out_ref.shape[1]), axis=0)

    return kernel


def bce_loss_pallas(logits, target, weight, v1_sigmoid, v2_sigmoid,
                    *, desired_tile_rows=4096):
    """Mean of -weight * BCE(clip(sigmoid(logits - v1 + v2), eps, 1-eps), target)."""
    B, C = logits.shape
    total = B * C

    w_vec = weight.astype(jnp.float32)
    s_vec = (v2_sigmoid - v1_sigmoid).astype(jnp.float32)

    z_item = jnp.dtype(logits.dtype).itemsize
    t_item = jnp.dtype(target.dtype).itemsize
    stream_row_bytes = (z_item + t_item) * _LANES

    # ---- lane-dense flatten (row-major); copies only when B*C % 128 != 0 ----
    if total % _LANES == 0:
        z2 = logits.reshape(-1, _LANES)
        t2 = target.reshape(-1, _LANES)
    else:
        # TODO(synk): this ragged-tail path pads the flat stream (one extra XLA
        #             copy of the inputs); only hit for odd B*C.
        pad = _round_up(total, _LANES) - total
        z2 = jnp.pad(logits.reshape(-1), (0, pad)).reshape(-1, _LANES)
        t2 = jnp.pad(target.reshape(-1), (0, pad)).reshape(-1, _LANES)
    n_rows = z2.shape[0]

    # ---- weight / shift periodicity along the lane-dense stream ----
    g = math.gcd(C, _LANES)
    period = C // g                                           # pattern period (rows)
    row_align = (period * _SUBLANES) // math.gcd(period, _SUBLANES)   # lcm(period, 8)
    # TODO(synk): a very large prime C makes row_align (and the min tile) huge;
    #             typical class counts (C <= ~10k with small factors) are fine.

    # ---- tile size from the VMEM budget (generation-safe) ----
    param_row_bytes = 0 if period == 1 else 2 * 2 * _LANES * 4   # w + s, double-buffered
    bytes_per_row = 2 * stream_row_bytes + param_row_bytes + _TEMP_ROW_BYTES
    hi = max(row_align,
             (_VMEM_BUDGET_BYTES // bytes_per_row) // row_align * row_align)
    hi = min(hi, max(row_align, (desired_tile_rows // row_align) * row_align))
    min_step_rows = _cdiv(2 << 20, stream_row_bytes)   # ~2 MiB of streamed input / step

    if n_rows < 2 * row_align:
        # Tiny input: a single tile (second TensorCore would only see padding).
        n_split, tps = 1, 1
        tile_rows = _round_up(n_rows, row_align)
    else:
        n_split = 2   # always feed both v7x TensorCores; sequential on v5e/v6e
        tps = max(1, min(4, n_rows // (n_split * min_step_rows)))   # pipeline depth
        tps = max(tps, _cdiv(_cdiv(n_rows, n_split), hi))           # VMEM budget cap
        tile_rows = _round_up(_cdiv(n_rows, n_split * tps), row_align)
        # Never let an entire tile fall past the end of the data.
        while tps > 1 and (n_split * tps - 1) * tile_rows >= n_rows:
            tps -= 1
            tile_rows = _round_up(_cdiv(n_rows, n_split * tps), row_align)

    span_rows = n_split * tps * tile_rows
    ragged = (span_rows * _LANES) != total

    # ---- periodic weight / shift tables (resident in VMEM) ----
    param_rows = 1 if period == 1 else tile_rows
    cls_idx = jnp.arange(param_rows * _LANES, dtype=jnp.int32) % C
    w_blk = w_vec[cls_idx].reshape(param_rows, _LANES)
    s_blk = s_vec[cls_idx].reshape(param_rows, _LANES)

    kernel = _make_bce_kernel(tps, tile_rows, total, ragged)

    cost = pl.CostEstimate(
        flops=18 * span_rows * _LANES,
        transcendentals=2 * span_rows * _LANES,
        bytes_accessed=total * (z_item + t_item)
                       + n_split * 2 * param_rows * _LANES * 4
                       + n_split * _SUBLANES * _LANES * 4,
    )

    partials = pl.pallas_call(
        kernel,
        out_shape=jax.ShapeDtypeStruct((n_split * _SUBLANES, _LANES), jnp.float32),
        grid_spec=pltpu.PrefetchScalarGridSpec(
            num_scalar_prefetch=0,
            grid=(n_split, tps),
            in_specs=[
                pl.BlockSpec((tile_rows, _LANES), lambda c, i: (c * tps + i, 0)),   # logits
                pl.BlockSpec((tile_rows, _LANES), lambda c, i: (c * tps + i, 0)),   # target
                pl.BlockSpec((param_rows, _LANES), lambda c, i: (0, 0)),            # weight
                pl.BlockSpec((param_rows, _LANES), lambda c, i: (0, 0)),            # shift
            ],
            out_specs=pl.BlockSpec((_SUBLANES, _LANES), lambda c, i: (c, 0)),
        ),
        compiler_params=pltpu.CompilerParams(
            dimension_semantics=("parallel", "arbitrary"),
            vmem_limit_bytes=_VMEM_LIMIT_BYTES,
        ),
        cost_estimate=cost,
    )(z2, t2, w_blk, s_blk)

    return jnp.sum(partials) / jnp.float32(total)


# ---------------------------------------------------------------------------
# Parameter construction (mirrors BCELoss.__init__), plain-JAX glue.
# ---------------------------------------------------------------------------
def _inverse(v):
    # mirrors BCELoss.inverse
    value = jnp.sort(v)
    idx0 = jnp.argsort(v)
    idx1 = jnp.argsort(idx0)
    idx2 = v.shape[0] - 1 - idx1
    return value[idx2]


def make_bce_params(cls_num_list, N, k1=0.0, k2=0.0):
    cls_num_list = jnp.asarray(cls_num_list, jnp.float32)
    N = jnp.float32(N)
    weight = N / cls_num_list
    v1_sigmoid = k1 * jnp.log(N / cls_num_list - 1.0 + EPS)
    v2_sigmoid = k2 * _inverse(jnp.log(N / cls_num_list - 1.0 + EPS))
    return weight, v1_sigmoid, v2_sigmoid


# Pure-JAX reference (matches the PyTorch forward, Sigmoid path, symbiotic=0).
def bce_loss_ref(logits, target, weight, v1, v2):
    z = logits.astype(jnp.float32)
    t = target.astype(jnp.float32)
    p = jax.nn.sigmoid(z - v1[None, :] + v2[None, :])
    p = jnp.clip(p, EPS, 1.0 - EPS)
    loss = -weight[None, :] * (t * jnp.log(p) + (1.0 - t) * jnp.log(1.0 - p))
    return jnp.mean(loss)


if __name__ == "__main__":
    key = jax.random.PRNGKey(0)

    def run_case(B, cls_num_list, k1, k2, case_key, dtype=jnp.float32, **kw):
        cls_num_list = jnp.asarray(cls_num_list, jnp.float32)
        N = float(jnp.sum(cls_num_list))
        C = cls_num_list.shape[0]
        weight, v1, v2 = make_bce_params(cls_num_list, N, k1=k1, k2=k2)

        k_logits, k_target = jax.random.split(case_key)
        logits = jax.random.normal(k_logits, (B, C), jnp.float32).astype(dtype)
        target = (jax.random.uniform(k_target, (B, C)) > 0.5).astype(dtype)

        out = jax.block_until_ready(
            bce_loss_pallas(logits, target, weight, v1, v2, **kw))
        ref = bce_loss_ref(logits, target, weight, v1, v2)
        assert jnp.allclose(out, ref, rtol=3e-5, atol=1e-4), \
            (B, int(C), str(dtype), float(out), float(ref))

    base16 = [500, 400, 320, 256, 200, 160, 128, 100, 80, 64,
              50, 40, 32, 25, 20, 16]
    base10 = base16[:10]
    keys = jax.random.split(key, 6)

    # Small demo shape (single tile, lane-dense + ragged-tail mask).
    run_case(32, base16, 0.1, 0.05, keys[0])
    # Lane-dense multi-tile path, 2-way core split, 1 step/core.
    run_case(16384, base16, 0.1, 0.05, keys[1])
    # Same data forced into multiple inner steps per core (accumulator path).
    run_case(16384, base16, 0.1, 0.05, keys[2], desired_tile_rows=512)
    # Ragged row count with the 2-way split (masked last tile).
    run_case(1000, base16, 0.1, 0.05, keys[3])
    # C that does not divide 128 -> periodic weight-table path (C=10).
    run_case(6, base10, 0.2, 0.1, keys[4])
    run_case(2048, base10, 0.2, 0.1, keys[4])
    # bf16 inputs (cast to f32 inside the kernel, half the HBM traffic).
    run_case(512, base16, 0.1, 0.05, keys[5], dtype=jnp.bfloat16)

    print("KERNEL_OK")
</pallas_src>

<mosaic_0001>
module attributes {stable_mosaic.version = 11 : i64} {
  func.func @kernel(%arg0: i32, %arg1: i32, %arg2: memref<8x128xf32, #tpu.memory_space<vmem>>, %arg3: memref<8x128xf32, #tpu.memory_space<vmem>>, %arg4: memref<1x128xf32, #tpu.memory_space<vmem>>, %arg5: memref<1x128xf32, #tpu.memory_space<vmem>>, %arg6: memref<8x128xf32, #tpu.memory_space<vmem>>) attributes {dimension_semantics = [#tpu.dimension_semantics<parallel>, #tpu.dimension_semantics<arbitrary>], iteration_bounds = array<i64: 1, 1>, scalar_prefetch = 0 : i64, scratch_operands = 0 : i64, tpu.core_type = #tpu.core_type<tc>, window_params = [{transform_indices = @transform_0, window_bounds = array<i64: 8, 128>}, {transform_indices = @transform_1, window_bounds = array<i64: 8, 128>}, {pipeline_mode = #tpu.pipeline_mode<synchronous>, transform_indices = @transform_2, window_bounds = array<i64: 1, 128>}, {pipeline_mode = #tpu.pipeline_mode<synchronous>, transform_indices = @transform_3, window_bounds = array<i64: 1, 128>}, {transform_indices = @transform_4, window_bounds = array<i64: 8, 128>}]} {
    %c0_i32 = arith.constant 0 : i32
    %0 = arith.cmpi eq, %arg1, %c0_i32 : i32
    %1 = arith.extui %0 : i1 to i32
    %c0_i32_0 = arith.constant 0 : i32
    %2 = arith.cmpi ne, %1, %c0_i32_0 : i32
    scf.if %2 {
      %cst_20 = arith.constant 0.000000e+00 : f32
      %52 = vector.broadcast %cst_20 : f32 to vector<8x128xf32>
      %c0_21 = arith.constant 0 : index
      %c0_22 = arith.constant 0 : index
      %53 = vector.load %arg6[%c0_21, %c0_22] : memref<8x128xf32, #tpu.memory_space<vmem>>, vector<8x128xf32>
      tpu.vector_store %arg6[%c0_21, %c0_22], %52 {strides = array<i32>} : memref<8x128xf32, #tpu.memory_space<vmem>>, vector<8x128xf32>,
    } else {
    }
    %c0 = arith.constant 0 : index
    %c0_1 = arith.constant 0 : index
    %3 = vector.load %arg2[%c0, %c0_1] : memref<8x128xf32, #tpu.memory_space<vmem>>, vector<8x128xf32>
    %c0_2 = arith.constant 0 : index
    %c0_3 = arith.constant 0 : index
    %4 = vector.load %arg5[%c0_2, %c0_3] : memref<1x128xf32, #tpu.memory_space<vmem>>, vector<1x128xf32>
    %5 = vector.broadcast %4 : vector<1x128xf32> to vector<8x128xf32>
    %6 = arith.addf %3, %5 : vector<8x128xf32>
    %c0_4 = arith.constant 0 : index
    %c0_5 = arith.constant 0 : index
    %7 = vector.load %arg3[%c0_4, %c0_5] : memref<8x128xf32, #tpu.memory_space<vmem>>, vector<8x128xf32>
    %8 = math.absf %6 : vector<8x128xf32>
    %cst = arith.constant 0.000000e+00 : f32
    %9 = vector.broadcast %cst : f32 to vector<8x128xf32>
    %10 = arith.subf %9, %8 : vector<8x128xf32>
    %11 = math.exp %10 : vector<8x128xf32>
    %cst_6 = arith.constant 1.000000e+00 : f32
    %12 = vector.broadcast %cst_6 : f32 to vector<8x128xf32>
    %13 = arith.addf %12, %11 : vector<8x128xf32>
    %14 = math.log %13 : vector<8x128xf32>
    %cst_7 = arith.constant 0.000000e+00 : f32
    %15 = vector.broadcast %cst_7 : f32 to vector<8x128xf32>
    %16 = arith.maximumf %6, %15 : vector<8x128xf32>
    %17 = arith.addf %16, %14 : vector<8x128xf32>
    %18 = arith.subf %17, %6 : vector<8x128xf32>
    %cst_8 = arith.constant 1.00000498E-5 : f32
    %cst_9 = arith.constant 11.5129251 : f32
    %19 = vector.broadcast %cst_8 : f32 to vector<8x128xf32>
    %20 = arith.maximumf %19, %17 : vector<8x128xf32>
    %21 = vector.broadcast %cst_9 : f32 to vector<8x128xf32>
    %22 = arith.minimumf %21, %20 : vector<8x128xf32>
    %cst_10 = arith.constant 1.00000498E-5 : f32
    %cst_11 = arith.constant 11.5129251 : f32
    %23 = vector.broadcast %cst_10 : f32 to vector<8x128xf32>
    %24 = arith.maximumf %23, %18 : vector<8x128xf32>
    %25 = vector.broadcast %cst_11 : f32 to vector<8x128xf32>
    %26 = arith.minimumf %25, %24 : vector<8x128xf32>
    %c0_12 = arith.constant 0 : index
    %c0_13 = arith.constant 0 : index
    %27 = vector.load %arg4[%c0_12, %c0_13] : memref<1x128xf32, #tpu.memory_space<vmem>>, vector<1x128xf32>
    %28 = arith.subf %26, %22 : vector<8x128xf32>
    %29 = arith.mulf %7, %28 : vector<8x128xf32>
    %30 = arith.addf %22, %29 : vector<8x128xf32>
    %31 = vector.broadcast %27 : vector<1x128xf32> to vector<8x128xf32>
    %32 = arith.mulf %31, %30 : vector<8x128xf32>
    %c1_i32 = arith.constant 1 : i32
    %33 = arith.muli %arg0, %c1_i32 : i32
    %34 = arith.addi %33, %arg1 : i32
    %c8_i32 = arith.constant 8 : i32
    %35 = arith.muli %34, %c8_i32 : i32
    %36 = tpu.iota {dimensions = array<i32: 0>} : vector<8x128xi32>
    %37 = vector.broadcast %35 : i32 to vector<8x128xi32>
    %38 = arith.addi %37, %36 : vector<8x128xi32>
    %39 = tpu.iota {dimensions = array<i32: 1>} : vector<8x128xi32>
    %c128_i32 = arith.constant 128 : i32
    %40 = vector.broadcast %c128_i32 : i32 to vector<8x128xi32>
    %41 = arith.muli %38, %40 : vector<8x128xi32>
    %42 = arith.addi %41, %39 : vector<8x128xi32>
    %c512_i32 = arith.constant 512 : i32
    %43 = vector.broadcast %c512_i32 : i32 to vector<8x128xi32>
    %44 = arith.cmpi slt, %42, %43 : vector<8x128xi32>
    %cst_14 = arith.constant 0.000000e+00 : f32
    %45 = vector.broadcast %cst_14 : f32 to vector<8x128xf32>
    %46 = arith.select %44, %32, %45 : vector<8x128xi1>, vector<8x128xf32>
    %c0_15 = arith.constant 0 : index
    %c0_16 = arith.constant 0 : index
    %47 = vector.load %arg6[%c0_15, %c0_16] : memref<8x128xf32, #tpu.memory_space<vmem>>, vector<8x128xf32>
    %48 = vector.shape_cast %46 : vector<8x128xf32> to vector<1x8x128xf32>
    %cst_17 = arith.constant dense<0.000000e+00> : vector<8x128xf32>
    %49 = vector.multi_reduction <add>, %48, %cst_17 [0] : vector<1x8x128xf32> to vector<8x128xf32>
    %50 = arith.addf %47, %49 : vector<8x128xf32>
    %c0_18 = arith.constant 0 : index
    %c0_19 = arith.constant 0 : index
    %51 = vector.load %arg6[%c0_18, %c0_19] : memref<8x128xf32, #tpu.memory_space<vmem>>, vector<8x128xf32>
    tpu.vector_store %arg6[%c0_18, %c0_19], %50 {strides = array<i32>} : memref<8x128xf32, #tpu.memory_space<vmem>>, vector<8x128xf32>,
    return
  }
  func.func @transform_0(%arg0: i32, %arg1: i32) -> (i32, i32) {
    %c1_i32 = arith.constant 1 : i32
    %0 = arith.muli %arg0, %c1_i32 : i32
    %1 = arith.addi %0, %arg1 : i32
    %c0_i32 = arith.constant 0 : i32
    %c0_i32_0 = arith.constant 0 : i32
    return %1, %c0_i32 : i32, i32
  }
  func.func @transform_1(%arg0: i32, %arg1: i32) -> (i32, i32) {
    %c1_i32 = arith.constant 1 : i32
    %0 = arith.muli %arg0, %c1_i32 : i32
    %1 = arith.addi %0, %arg1 : i32
    %c0_i32 = arith.constant 0 : i32
    %c0_i32_0 = arith.constant 0 : i32
    return %1, %c0_i32 : i32, i32
  }
  func.func @transform_2(%arg0: i32, %arg1: i32) -> (i32, i32) {
    %c0_i32 = arith.constant 0 : i32
    %c0_i32_0 = arith.constant 0 : i32
    %c0_i32_1 = arith.constant 0 : i32
    return %c0_i32, %c0_i32_0 : i32, i32
  }
  func.func @transform_3(%arg0: i32, %arg1: i32) -> (i32, i32) {
    %c0_i32 = arith.constant 0 : i32
    %c0_i32_0 = arith.constant 0 : i32
    %c0_i32_1 = arith.constant 0 : i32
    return %c0_i32, %c0_i32_0 : i32, i32
  }
  func.func @transform_4(%arg0: i32, %arg1: i32) -> (i32, i32) {
    %c0_i32 = arith.constant 0 : i32
    %c0_i32_0 = arith.constant 0 : i32
    return %arg0, %c0_i32 : i32, i32
  }
}

</mosaic_0001>

<llo_original>
// kernel: tpu_custom_call.1
$region0: #{tpu_custom_call.1}
  #allocation0 [shape = 'u32[]', space=smem, size = 0x4, offset = 0x4, fixed_abs, tag = 'smem constant byte address 0x4 - core index']
  #allocation1 [shape = 'u32[144,128]{1,0:T(1,128)}', space=vmem, size = 0x12000, scoped, tag = 'internal scratch']
  %s0 = inlined_call_operand.hbm [shape: f32[4,128], index: 0, kind: input, shape index: {}]
  %s1 = inlined_call_operand.hbm [shape: f32[4,128], index: 1, kind: input, shape index: {}]
  %s2 = inlined_call_operand.vmem [shape: f32[1,128], index: 2, kind: input, shape index: {}]
  %s3 = inlined_call_operand.vmem [shape: f32[1,128], index: 3, kind: input, shape index: {}]
  %s4 = inlined_call_operand.hbm [shape: f32[8,128], index: 4, kind: output, shape index: {}]
  %s5 = sld [smem:[#allocation0]]
  $region38: #{tpu_custom_call.1} parent=0
    _
  %s7 = ssub.s32 1, %s5
  %s8 = scalar_select 0, %s7, %s5
  $region1: #{tpu_custom_call.1} parent=0
    #allocation2 [shape = 'u8[4096]{0}', space=vmem, size = 0x1000, scoped, tag = 'input window, operand 0, single buffered']
    #allocation3 [shape = 's32[1]{0}', space=sflag, size = 0x4, scoped, tag = 'scoped memory for tpu_custom_call.1']
    #allocation4 [shape = 's32[1]{0}', space=sflag, size = 0x4, scoped, tag = 'scoped memory for tpu_custom_call.1']
    #allocation5 [shape = 'u8[4096]{0}', space=vmem, size = 0x1000, scoped, tag = 'input window, operand 1, single buffered']
    #allocation6 [shape = 's32[1]{0}', space=sflag, size = 0x4, scoped, tag = 'scoped memory for tpu_custom_call.1']
    #allocation7 [shape = 'u8[4096]{0}', space=vmem, size = 0x1000, scoped, tag = 'output window, operand 0, single buffered']
    %9 = vsyncpa [#allocation3], 0
    %10 = vsyncpa [#allocation6], 0
    %11 = vsyncpa [#allocation4], 0
    // Predicated region
    $region2: #{tpu_custom_call.1} parent=1 // pred_check
      _
    $region3: #{tpu_custom_call.1} parent=1 // pred_check_branch
      %13 = sbr.rel (0) target = $region5
    $region4: #{tpu_custom_call.1} parent=1 // pred_region
      %s14 = sadd.s32 0, 0
      %s15 = smul.u32 2, %s14
      %s16 = ssub.s32 1, %s15
      %s17 = smul.u32 64, %s16
      %s19 = ssub.s32 128, %s17
      %20 = vsyncadd [#allocation3], %s19
      %p21 = scmp.ne.s32.totalorder 0, %s17
      %s22 = smul.addr %s15, 64
      %s23 = scalar_lea.hbm %s0, %s22
      %s24 = smul.u32 4, %s16
      %s25 = sshll.u32 [#allocation2], 4
      %s26 = int_to_ptr.vmem [resolvable:$true] %s25
      %s27 = sshll.u32 %s24, 4
      %31 = dma.hbm_to_vmem [thread:$0]  (%p21), %s23, %s27, %s26, [#allocation3], 64, 64, 4
    $region5: #{tpu_custom_call.1} parent=1 // pred_fallthru
      _
    // Predicated region
    $region6: #{tpu_custom_call.1} parent=1 // pred_check
      _
    $region7: #{tpu_custom_call.1} parent=1 // pred_check_branch
      %33 = sbr.rel (0) target = $region9
    $region8: #{tpu_custom_call.1} parent=1 // pred_region
      %s34 = sadd.s32 0, 0
      %s35 = smul.u32 2, %s34
      %s36 = ssub.s32 1, %s35
      %s37 = smul.u32 64, %s36
      %s39 = ssub.s32 128, %s37
      %40 = vsyncadd [#allocation6], %s39
      %p41 = scmp.ne.s32.totalorder 0, %s37
      %s42 = smul.addr %s35, 64
      %s43 = scalar_lea.hbm %s1, %s42
      %s44 = smul.u32 4, %s36
      %s45 = sshll.u32 [#allocation5], 4
      %s46 = int_to_ptr.vmem [resolvable:$true] %s45
      %s47 = sshll.u32 %s44, 4
      %51 = dma.hbm_to_vmem [thread:$0]  (%p41), %s43, %s47, %s46, [#allocation6], 64, 64, 4
    $region9: #{tpu_custom_call.1} parent=1 // pred_fallthru
      _
    // Predicated region
    $region10: #{tpu_custom_call.1} parent=1 // pred_check
      _
    $region11: #{tpu_custom_call.1} parent=1 // pred_check_branch
      %53 = sbr.rel (0) target = $region13
    $region12: #{tpu_custom_call.1} parent=1 // pred_region
      _
    $region13: #{tpu_custom_call.1} parent=1 // pred_fallthru
      _
    // Predicated region
    $region14: #{tpu_custom_call.1} parent=1 // pred_check
      _
    $region15: #{tpu_custom_call.1} parent=1 // pred_check_branch
      %55 = sbr.rel (0) target = $region17
    $region16: #{tpu_custom_call.1} parent=1 // pred_region
      _
    $region17: #{tpu_custom_call.1} parent=1 // pred_fallthru
      _
    // Predicated region
    $region18: #{tpu_custom_call.1} parent=1 // pred_check
      _
    $region19: #{tpu_custom_call.1} parent=1 // pred_check_branch
      %57 = sbr.rel (0) target = $region21
    $region20: #{tpu_custom_call.1} parent=1 // pred_region
      %58 = dma.done [#allocation3], 128
    $region21: #{tpu_custom_call.1} parent=1 // pred_fallthru
      _
    // Predicated region
    $region22: #{tpu_custom_call.1} parent=1 // pred_check
      _
    $region23: #{tpu_custom_call.1} parent=1 // pred_check_branch
      %60 = sbr.rel (0) target = $region25
    $region24: #{tpu_custom_call.1} parent=1 // pred_region
      %61 = dma.done [#allocation6], 128
    $region25: #{tpu_custom_call.1} parent=1 // pred_fallthru
      _
    %s62 = sadd.s32 0, 0
    %s63 = smul.u32 2, %s62
    %s64 = ssub.s32 1, %s63
    %s65 = smul.u32 64, %s64
    %s66 = sadd.s32 0, 0
    %s67 = smul.u32 2, %s66
    %s68 = ssub.s32 1, %s67
    %s69 = smul.u32 64, %s68
    %p70 = scmp.eq.s32.totalorder 0, 0
    // Predicated region
    $region26: #{tpu_custom_call.1} parent=1 // pred_check
      %p71 = pneg %p70
    $region27: #{tpu_custom_call.1} parent=1 // pred_check_branch
      %73 = sbr.rel (%p71) target = $region29
    $region28: #{tpu_custom_call.1} parent=1 // pred_region
      %74 = vst [vmem:[#allocation7] sm:$0xff] 0.0
    $region29: #{tpu_custom_call.1} parent=1 // pred_fallthru
      _
    %v75 = vld [vmem:[#allocation2] sm:$0xff]
    %v76 = vld [vmem:[%s3] sm:$0x1]
    %v78 = vlaneseq
    %v79 = vshrl.u32 %v78, 7
    %v80 = vsub.s32 0, %v79
    %v81 = vrot.slane %v76, %v80
    %v83 = vadd.f32 %v75, %v81
    %v84 = vld [vmem:[#allocation5] sm:$0xff]
    %v85 = vand.u32 2147483647, %v83
    %v86 = vsub.f32 0.0, %v85
    %v87 = vmul.f32 %v86, 1.442695
    %v88 = vpow.pop %v87
    %v89 = vadd.f32 %v88, 1.0
    %v90 = vlog2.pop %v89
    %v91 = vmul.f32 %v90, 0.6931472
    %v92 = vmax.f32 %v83, 0.0
    %v93 = vadd.f32 %v92, %v91
    %v94 = vsub.f32 %v93, %v83
    %v95 = vmax.f32 %v93, 1.000005e-05
    %v96 = vmin.f32 %v95, 11.512925
    %v97 = vmax.f32 %v94, 1.000005e-05
    %v98 = vmin.f32 %v97, 11.512925
    %v99 = vld [vmem:[%s2] sm:$0x1]
    %v100 = vsub.f32 %v98, %v96
    %v101 = vmul.f32 %v84, %v100
    %v102 = vadd.f32 %v96, %v101
    %v104 = vlaneseq
    %v105 = vshrl.u32 %v104, 7
    %v106 = vsub.s32 0, %v105
    %v107 = vrot.slane %v99, %v106
    %v109 = vmul.f32 %v107, %v102
    %s110 = sadd.s32 0, 0
    %s111 = smul.u32 %s110, 8
    %v112 = vlaneseq
    %v113 = vshrl.u32 %v112, 7
    %v114 = vstv %s111
    %v115 = vadd.s32 %v114, %v113
    %v116 = vlaneseq
    %v117 = vand.u32 %v116, 127
    %v118 = vmul.u32 %v115, 128
    %v119 = vadd.s32 %v118, %v117
    %vm120 = vcmp.lt.s32.totalorder %v119, 512
    %v121 = vsel %vm120, %v109, 0.0
    %v122 = vld [vmem:[#allocation7] sm:$0xff]
    %v123 = vadd.f32 %v121, 0.0
    %v124 = vadd.f32 %v122, %v123
    %125 = vst [vmem:[#allocation7] sm:$0xff] %v124
    // Predicated region
    $region30: #{tpu_custom_call.1} parent=1 // pred_check
      _
    $region31: #{tpu_custom_call.1} parent=1 // pred_check_branch
      %127 = sbr.rel (0) target = $region33
    $region32: #{tpu_custom_call.1} parent=1 // pred_region
      %s129 = ssub.s32 128, 128
      %130 = vsyncadd [#allocation4], %s129
      %s132 = sshll.u32 [#allocation7], 4
      %s133 = int_to_ptr.vmem [resolvable:$true] %s132
      %135 = dma.vmem_to_hbm [thread:$0]  %s133, 128, %s4, [#allocation4]
    $region33: #{tpu_custom_call.1} parent=1 // pred_fallthru
      _
    // Predicated region
    $region34: #{tpu_custom_call.1} parent=1 // pred_check
      _
    $region35: #{tpu_custom_call.1} parent=1 // pred_check_branch
      %137 = sbr.rel (0) target = $region37
    $region36: #{tpu_custom_call.1} parent=1 // pred_region
      %138 = dma.done [#allocation4], 128
    $region37: #{tpu_custom_call.1} parent=1 // pred_fallthru
      _
    %139 = vsyncpa [#allocation3], 1
    %140 = vsyncpa [#allocation6], 1
    %141 = vsyncpa [#allocation4], 1

</llo_original>
